<compile_context>
chip_gen: v5e
topology: v5e:2x2
jax: 0.10.0
libtpu: 0.0.40
codegen_flags: <defaults>
</compile_context>

<pallas_src>
import jax
import jax.numpy as jnp
from jax import lax
from jax.experimental import pallas as pl
from jax.experimental.pallas import tpu as pltpu


# ---------------------------------------------------------------------------
# Packed-parameter slab layout: (PARAM_ROWS, PARAM_COLS) float32.
#   rows   0:16  cols 0:11 -> W_in  (16, 11)   col BIAS_COL -> b_in  (16,)
#   rows  16:48  cols 0:16 -> W_fc1 (32, 16)   col BIAS_COL -> b_fc1 (32,)
#   rows  48:80  cols 0:32 -> W_fc2 (32, 32)   col BIAS_COL -> b_fc2 (32,)
#   row   80     cols 0:32 -> W_out (1, 32)    col BIAS_COL -> b_out (1,)
# ---------------------------------------------------------------------------
PARAM_ROWS = 88            # 81 rows used, padded to a sublane multiple of 8
PARAM_COLS = 128
BIAS_COL = 64
N_FEATURES = 11


def annwine_kernel(x_ref, p_ref, o_ref):
    x = x_ref[...]                                    # (TILE_B, 11), native batch-major layout

    # Layer 1: 11 -> 16.  Contract the feature axis of BOTH operands so the
    # result is (16, TILE_B): batch stays on the lane axis, no in-kernel
    # transpose of the x tile is needed.
    w_in = p_ref[0:16, 0:N_FEATURES]                  # (16, 11)
    b_in = p_ref[0:16, BIAS_COL:BIAS_COL + 1]         # (16, 1)
    h = lax.dot_general(w_in, x, (((1,), (1,)), ((), ())),
                        preferred_element_type=jnp.float32)
    h = jnp.maximum(h + b_in, 0.0)                    # (16, TILE_B)

    # Layer 2: 16 -> 32
    w1 = p_ref[16:48, 0:16]                           # (32, 16)
    b1 = p_ref[16:48, BIAS_COL:BIAS_COL + 1]          # (32, 1)
    h = jnp.dot(w1, h, preferred_element_type=jnp.float32)
    h = jnp.maximum(h + b1, 0.0)                      # (32, TILE_B)

    # Layer 3: 32 -> 32
    w2 = p_ref[48:80, 0:32]                           # (32, 32)
    b2 = p_ref[48:80, BIAS_COL:BIAS_COL + 1]          # (32, 1)
    h = jnp.dot(w2, h, preferred_element_type=jnp.float32)
    h = jnp.maximum(h + b2, 0.0)                      # (32, TILE_B)

    # Output layer: 32 -> 1 as an M=1, N=TILE_B MXU dot (lane-dense output,
    # keeps the VPU/XLU slots free).
    w_out = p_ref[80:81, 0:32]                        # (1, 32)
    b_out = p_ref[80:81, BIAS_COL:BIAS_COL + 1]       # (1, 1)
    o_ref[...] = jnp.dot(w_out, h, preferred_element_type=jnp.float32) + b_out


def pack_params(p):
    """Pack all weights/biases (PyTorch (out, in) layout) into one VMEM slab."""
    slab = jnp.zeros((PARAM_ROWS, PARAM_COLS), jnp.float32)
    slab = slab.at[0:16, 0:N_FEATURES].set(p["w_in"])
    slab = slab.at[0:16, BIAS_COL].set(p["b_in"])
    slab = slab.at[16:48, 0:16].set(p["w_fc1"])
    slab = slab.at[16:48, BIAS_COL].set(p["b_fc1"])
    slab = slab.at[48:80, 0:32].set(p["w_fc2"])
    slab = slab.at[48:80, BIAS_COL].set(p["b_fc2"])
    slab = slab.at[80, 0:32].set(p["w_out"][0])       # (1, 32) -> row 80
    slab = slab.at[80, BIAS_COL].set(p["b_out"][0])
    return slab


def _choose_tile_b(B, max_tile_b):
    """>=2 balanced lane-tiles (both v7x TCs busy), multiples of 128 lanes,
    capped so VMEM stays well under v5e's 16 MiB scoped default."""
    tile = 128 * pl.cdiv(pl.cdiv(B, 2), 128)
    return max(128, min(max_tile_b, tile))


def annwine_forward(x, param_slab, *, tile_b=None, max_tile_b=4096):
    """x: (B, 11) float32.  param_slab: output of pack_params.  Returns (B, 1)."""
    B = x.shape[0]
    if tile_b is None:
        tile_b = _choose_tile_b(B, max_tile_b)
    num_tiles = pl.cdiv(B, tile_b)

    out_t = pl.pallas_call(
        annwine_kernel,
        out_shape=jax.ShapeDtypeStruct((1, B), jnp.float32),
        grid=(num_tiles,),
        in_specs=[
            # x streamed in native (B, 11) layout; tail tile is padded/masked.
            pl.BlockSpec((tile_b, N_FEATURES), lambda i: (i, 0)),
            # Resident param slab: constant index_map, single-buffered.
            pl.BlockSpec((PARAM_ROWS, PARAM_COLS), lambda i: (0, 0),
                         pipeline_mode=pl.Buffered(1)),
        ],
        out_specs=pl.BlockSpec((1, tile_b), lambda i: (0, i)),  # lane-dense output
        compiler_params=pltpu.CompilerParams(
            dimension_semantics=("parallel",)),
    )(x, param_slab)

    return out_t.T                                    # (1, B) -> (B, 1)


def init_params(key):
    """Deterministic init mirroring nn.Linear default (uniform +-1/sqrt(fan_in)).

    Weights are stored in PyTorch layout (out_features, in_features); biases (out,).
    """
    sizes = [("in", 11, 16), ("fc1", 16, 32), ("fc2", 32, 32), ("out", 32, 1)]
    params = {}
    for name, fan_in, fan_out in sizes:
        key, kw, kb = jax.random.split(key, 3)
        bound = 1.0 / float(fan_in) ** 0.5
        params[f"w_{name}"] = jax.random.uniform(
            kw, (fan_out, fan_in), jnp.float32, minval=-bound, maxval=bound)
        params[f"b_{name}"] = jax.random.uniform(
            kb, (fan_out,), jnp.float32, minval=-bound, maxval=bound)
    return params


def annwine_reference(x, p):
    h = jax.nn.relu(x @ p["w_in"].T + p["b_in"])
    h = jax.nn.relu(h @ p["w_fc1"].T + p["b_fc1"])
    h = jax.nn.relu(h @ p["w_fc2"].T + p["b_fc2"])
    return h @ p["w_out"].T + p["b_out"]


if __name__ == "__main__":
    key = jax.random.PRNGKey(0)
    key, kx = jax.random.split(key)

    # Non-trivial batch: auto tile choice gives 2 tiles of 384 lanes (both
    # v7x TensorCores busy) with a masked partial tail (600 = 384 + 216).
    B = 600
    x = jax.random.normal(kx, (B, N_FEATURES), dtype=jnp.float32)
    params = init_params(key)
    slab = pack_params(params)

    out = annwine_forward(x, slab)
    out = jax.block_until_ready(out)

    ref = annwine_reference(x, params)
    assert out.shape == (B, 1), out.shape
    assert jnp.allclose(out, ref, atol=1e-5, rtol=1e-5), (
        f"max abs diff {jnp.max(jnp.abs(out - ref))}")

    print("KERNEL_OK")
</pallas_src>

<mosaic_0001>
module attributes {stable_mosaic.version = 11 : i64} {
  func.func @annwine_kernel(%arg0: i32, %arg1: memref<384x11xf32, #tpu.memory_space<vmem>>, %arg2: memref<88x128xf32, #tpu.memory_space<vmem>>, %arg3: memref<1x384xf32, #tpu.memory_space<vmem>>) attributes {dimension_semantics = [#tpu.dimension_semantics<parallel>], iteration_bounds = array<i64: 2>, scalar_prefetch = 0 : i64, scratch_operands = 0 : i64, tpu.core_type = #tpu.core_type<tc>, window_params = [{transform_indices = @transform_0, window_bounds = array<i64: 384, 11>}, {pipeline_mode = #tpu.pipeline_mode<synchronous>, transform_indices = @transform_1, window_bounds = array<i64: 88, 128>}, {transform_indices = @transform_2, window_bounds = array<i64: 1, 384>}]} {
    %c0 = arith.constant 0 : index
    %c0_0 = arith.constant 0 : index
    %0 = vector.load %arg1[%c0, %c0_0] : memref<384x11xf32, #tpu.memory_space<vmem>>, vector<384x11xf32>
    %c0_1 = arith.constant 0 : index
    %c0_2 = arith.constant 0 : index
    %1 = vector.load %arg2[%c0_1, %c0_2] : memref<88x128xf32, #tpu.memory_space<vmem>>, vector<16x11xf32>
    %c0_3 = arith.constant 0 : index
    %c64 = arith.constant 64 : index
    %2 = vector.load %arg2[%c0_3, %c64] : memref<88x128xf32, #tpu.memory_space<vmem>>, vector<16x1xf32>
    %cst = arith.constant dense<0.000000e+00> : vector<16x384xf32>
    %3 = tpu.matmul %1, %0, %cst {dimension_numbers = #tpu.dot_dimension_numbers<[1], [1], [0], [0], [0, 0, 1, 0], [], []>} : vector<16x11xf32>, vector<384x11xf32>, vector<16x384xf32> -> vector<16x384xf32>
    %4 = vector.broadcast %2 : vector<16x1xf32> to vector<16x384xf32>
    %5 = arith.addf %3, %4 : vector<16x384xf32>
    %cst_4 = arith.constant 0.000000e+00 : f32
    %6 = vector.broadcast %cst_4 : f32 to vector<16x384xf32>
    %7 = arith.maximumf %5, %6 : vector<16x384xf32>
    %c16 = arith.constant 16 : index
    %c0_5 = arith.constant 0 : index
    %8 = vector.load %arg2[%c16, %c0_5] : memref<88x128xf32, #tpu.memory_space<vmem>>, vector<32x16xf32>
    %c16_6 = arith.constant 16 : index
    %c64_7 = arith.constant 64 : index
    %9 = vector.load %arg2[%c16_6, %c64_7] : memref<88x128xf32, #tpu.memory_space<vmem>>, vector<32x1xf32>
    %cst_8 = arith.constant dense<0.000000e+00> : vector<32x384xf32>
    %10 = tpu.matmul %8, %7, %cst_8 {dimension_numbers = #tpu.dot_dimension_numbers<[1], [0], [0], [1], [0, 0, 1, 1], [], []>} : vector<32x16xf32>, vector<16x384xf32>, vector<32x384xf32> -> vector<32x384xf32>
    %11 = vector.broadcast %9 : vector<32x1xf32> to vector<32x384xf32>
    %12 = arith.addf %10, %11 : vector<32x384xf32>
    %cst_9 = arith.constant 0.000000e+00 : f32
    %13 = vector.broadcast %cst_9 : f32 to vector<32x384xf32>
    %14 = arith.maximumf %12, %13 : vector<32x384xf32>
    %c48 = arith.constant 48 : index
    %c0_10 = arith.constant 0 : index
    %15 = vector.load %arg2[%c48, %c0_10] : memref<88x128xf32, #tpu.memory_space<vmem>>, vector<32x32xf32>
    %c48_11 = arith.constant 48 : index
    %c64_12 = arith.constant 64 : index
    %16 = vector.load %arg2[%c48_11, %c64_12] : memref<88x128xf32, #tpu.memory_space<vmem>>, vector<32x1xf32>
    %cst_13 = arith.constant dense<0.000000e+00> : vector<32x384xf32>
    %17 = tpu.matmul %15, %14, %cst_13 {dimension_numbers = #tpu.dot_dimension_numbers<[1], [0], [0], [1], [0, 0, 1, 1], [], []>} : vector<32x32xf32>, vector<32x384xf32>, vector<32x384xf32> -> vector<32x384xf32>
    %18 = vector.broadcast %16 : vector<32x1xf32> to vector<32x384xf32>
    %19 = arith.addf %17, %18 : vector<32x384xf32>
    %cst_14 = arith.constant 0.000000e+00 : f32
    %20 = vector.broadcast %cst_14 : f32 to vector<32x384xf32>
    %21 = arith.maximumf %19, %20 : vector<32x384xf32>
    %c80 = arith.constant 80 : index
    %c0_15 = arith.constant 0 : index
    %22 = vector.load %arg2[%c80, %c0_15] : memref<88x128xf32, #tpu.memory_space<vmem>>, vector<1x32xf32>
    %c80_16 = arith.constant 80 : index
    %c64_17 = arith.constant 64 : index
    %23 = vector.load %arg2[%c80_16, %c64_17] : memref<88x128xf32, #tpu.memory_space<vmem>>, vector<1x1xf32>
    %cst_18 = arith.constant dense<0.000000e+00> : vector<1x384xf32>
    %24 = tpu.matmul %22, %21, %cst_18 {dimension_numbers = #tpu.dot_dimension_numbers<[1], [0], [0], [1], [0, 0, 1, 1], [], []>} : vector<1x32xf32>, vector<32x384xf32>, vector<1x384xf32> -> vector<1x384xf32>
    %25 = vector.broadcast %23 : vector<1x1xf32> to vector<1x384xf32>
    %26 = arith.addf %24, %25 : vector<1x384xf32>
    %c0_19 = arith.constant 0 : index
    %c0_20 = arith.constant 0 : index
    %27 = vector.load %arg3[%c0_19, %c0_20] : memref<1x384xf32, #tpu.memory_space<vmem>>, vector<1x384xf32>
    tpu.vector_store %arg3[%c0_19, %c0_20], %26 {strides = array<i32>} : memref<1x384xf32, #tpu.memory_space<vmem>>, vector<1x384xf32>,
    return
  }
  func.func @transform_0(%arg0: i32) -> (i32, i32) {
    %c0_i32 = arith.constant 0 : i32
    %c0_i32_0 = arith.constant 0 : i32
    return %arg0, %c0_i32 : i32, i32
  }
  func.func @transform_1(%arg0: i32) -> (i32, i32) {
    %c0_i32 = arith.constant 0 : i32
    %c0_i32_0 = arith.constant 0 : i32
    %c0_i32_1 = arith.constant 0 : i32
    return %c0_i32, %c0_i32_0 : i32, i32
  }
  func.func @transform_2(%arg0: i32) -> (i32, i32) {
    %c0_i32 = arith.constant 0 : i32
    %c0_i32_0 = arith.constant 0 : i32
    return %c0_i32, %arg0 : i32, i32
  }
}

</mosaic_0001>

<llo_original>
// kernel: tpu_custom_call.1
$region0: #{tpu_custom_call.1}
  #allocation0 [shape = 'u32[]', space=smem, size = 0x4, offset = 0x4, fixed_abs, tag = 'smem constant byte address 0x4 - core index']
  #allocation1 [shape = 'u32[72,128]{1,0:T(1,128)}', space=vmem, size = 0x9000, scoped, tag = 'internal scratch']
  %s0 = inlined_call_operand.vmem [shape: f32[600,11], index: 0, kind: input, shape index: {}]
  %s1 = inlined_call_operand.vmem [shape: f32[88,128], index: 1, kind: input, shape index: {}]
  %s2 = inlined_call_operand.hbm [shape: f32[1,600], index: 2, kind: output, shape index: {}]
  %s3 = sld [smem:[#allocation0]]
  $region41: #{tpu_custom_call.1} parent=0
    _
  %s5 = ssub.s32 1, %s3
  %s6 = scalar_select 0, %s5, %s3
  $region1: #{tpu_custom_call.1} parent=0
    #allocation2 [shape = 'u8[3072]{0}', space=vmem, size = 0xc00, scoped, tag = 'output window, operand 0']
    #allocation3 [shape = 's32[2]{0}', space=sflag, size = 0x8, scoped, tag = 'scoped memory for tpu_custom_call.1']
    %7 = vsyncpa [#allocation3], 0
    %s8 = scalar_lea.sflag [#allocation3], 1
    %9 = vsyncpa %s8, 0
    loop: start=0, step=1, limit=4
    $region2: #{tpu_custom_call.1} parent=1 // loop_pre_header
      _
    $region3: #{tpu_custom_call.1} parent=1 // loop_header
      %s11 = sphi 0, %s15
      %p12 = scmp.ge.s32.totalorder %s11, 4
      %s21 = sphi 0, %s23
      %s24 = sphi 0, %s21
      %s25 = sphi 0, %s24
      %s41 = sphi 0, %s25
      %s45 = sphi 0, %s45
      %s47 = sphi 0, %s45
      %s48 = sphi 0, %s47
      %s62 = sphi 0, %s48
      %s68 = sphi 0, %s70
      %s71 = sphi 0, %s68
      %s72 = sphi 0, %s71
      %s88 = sphi 0, %s72
    $region4: #{tpu_custom_call.1} parent=1 // loop_header_branch
      %14 = sbr.rel (%p12) target = $region8
    $region5: #{tpu_custom_call.1} parent=1 // loop_body
      %s16 = ssub.s32 %s11, 1
      %s17 = ssub.s32 %s11, 2
      %s18 = sadd.s32 %s11, 1
      %s19 = ssub.s32 %s11, %s18
      %p20 = scmp.eq.s32.totalorder %s19, 0
      %s22 = sadd.s32 %s21, 1
      %s23 = scalar_select %p20, %s21, %s22
      %p26 = pneg %p20
      %p27 = scmp.eq.s32.totalorder %s11, 1
      %p28 = por %p26, %p27
      %p29 = scmp.ne.s32.totalorder %s21, %s24
      %p30 = scmp.eq.s32.totalorder %s11, 0
      %p31 = por %p29, %p30
      %p32 = scmp.ne.s32.totalorder %s21, %s24
      %p33 = scmp.eq.s32.totalorder %s16, 1
      %p34 = por %p32, %p33
      %p35 = scmp.ne.s32.totalorder %s24, %s25
      %p36 = scmp.eq.s32.totalorder %s16, 0
      %p37 = por %p35, %p36
      %p38 = scmp.ne.s32.totalorder %s24, %s25
      %p39 = scmp.eq.s32.totalorder %s17, 1
      %p40 = por %p38, %p39
      %p42 = scmp.ne.s32.totalorder %s25, %s41
      %p43 = scmp.eq.s32.totalorder %s17, 0
      %p44 = por %p42, %p43
      %s46 = sadd.s32 %s45, 1
      %p49 = scmp.eq.s32.totalorder %s11, 1
      %p50 = scmp.ne.s32.totalorder %s45, %s47
      %p51 = scmp.eq.s32.totalorder %s11, 0
      %p52 = por %p50, %p51
      %p53 = scmp.ne.s32.totalorder %s45, %s47
      %p54 = scmp.eq.s32.totalorder %s16, 1
      %p55 = por %p53, %p54
      %p56 = scmp.ne.s32.totalorder %s47, %s48
      %p57 = scmp.eq.s32.totalorder %s16, 0
      %p58 = por %p56, %p57
      %p59 = scmp.ne.s32.totalorder %s47, %s48
      %p60 = scmp.eq.s32.totalorder %s17, 1
      %p61 = por %p59, %p60
      %p63 = scmp.ne.s32.totalorder %s48, %s62
      %p64 = scmp.eq.s32.totalorder %s17, 0
      %p65 = por %p63, %p64
      %s66 = ssub.s32 %s11, %s18
      %p67 = scmp.eq.s32.totalorder %s66, 0
      %s69 = sadd.s32 %s68, 1
      %s70 = scalar_select %p67, %s68, %s69
      %p73 = pneg %p67
      %p74 = scmp.eq.s32.totalorder %s11, 1
      %p75 = por %p73, %p74
      %p76 = scmp.ne.s32.totalorder %s68, %s71
      %p77 = scmp.eq.s32.totalorder %s11, 0
      %p78 = por %p76, %p77
      %p79 = scmp.ne.s32.totalorder %s68, %s71
      %p80 = scmp.eq.s32.totalorder %s16, 1
      %p81 = por %p79, %p80
      %p82 = scmp.ne.s32.totalorder %s71, %s72
      %p83 = scmp.eq.s32.totalorder %s16, 0
      %p84 = por %p82, %p83
      %p85 = scmp.ne.s32.totalorder %s71, %s72
      %p86 = scmp.eq.s32.totalorder %s17, 1
      %p87 = por %p85, %p86
      %p89 = scmp.ne.s32.totalorder %s72, %s88
      %p90 = scmp.eq.s32.totalorder %s17, 0
      %p91 = por %p89, %p90
      %p92 = scmp.le.s32.totalorder 1, %s11
      %p93 = scmp.lt.s32.totalorder %s11, 3
      %p94 = pnand %p92, %p93
      %p95 = pneg %p94
      // Predicated region
      $region9: #{tpu_custom_call.1} parent=5 // pred_check
        _
      $region10: #{tpu_custom_call.1} parent=5 // pred_check_branch
        %97 = sbr.rel (%p94) target = $region12
      $region11: #{tpu_custom_call.1} parent=5 // pred_region
        %s98 = ssub.s32 %s11, 1
        // Predicated region
        $region13: #{tpu_custom_call.1} parent=11 // pred_check
          %p99 = pneg %p58
        $region14: #{tpu_custom_call.1} parent=11 // pred_check_branch
          %101 = sbr.rel (%p99) target = $region16
        $region15: #{tpu_custom_call.1} parent=11 // pred_region
          _
        $region16: #{tpu_custom_call.1} parent=11 // pred_fallthru
          _
      $region12: #{tpu_custom_call.1} parent=5 // pred_fallthru
        _
      %p102 = scmp.lt.s32.totalorder %s11, 2
      // Predicated region
      $region17: #{tpu_custom_call.1} parent=5 // pred_check
        %p103 = pneg %p102
      $region18: #{tpu_custom_call.1} parent=5 // pred_check_branch
        %105 = sbr.rel (%p103) target = $region20
      $region19: #{tpu_custom_call.1} parent=5 // pred_region
        // Predicated region
        $region21: #{tpu_custom_call.1} parent=19 // pred_check
          %p106 = pneg %p31
        $region22: #{tpu_custom_call.1} parent=19 // pred_check_branch
          %108 = sbr.rel (%p106) target = $region24
        $region23: #{tpu_custom_call.1} parent=19 // pred_region
          %s109 = smul.u32 48, %s11
          %s110 = ssub.s32 75, %s109
          %p111 = scmp.lt.s32.totalorder %s110, 48
          %s112 = scalar_select %p111, %s110, 48
          %s113 = smul.u32 8, %s112
          %p114 = scmp.lt.s32.totalorder %s109, 74
          %s115 = scalar_select %p114, %s109, 74
          %s116 = smul.addr %s115, 8
          %s117 = scalar_lea.vmem %s0, %s116
          %s118 = smul.u32 48, %s11
          %s119 = ssub.s32 75, %s118
          %p120 = scmp.lt.s32.totalorder %s119, 48
          %s121 = scalar_select %p120, %s119, 48
          %s122 = smul.u32 8, %s121
        $region24: #{tpu_custom_call.1} parent=19 // pred_fallthru
          _
      $region20: #{tpu_custom_call.1} parent=5 // pred_fallthru
        _
      %p123 = scmp.le.s32.totalorder 1, %s11
      %p124 = scmp.lt.s32.totalorder %s11, 3
      %p125 = pnand %p123, %p124
      %p126 = pneg %p125
      // Predicated region
      $region25: #{tpu_custom_call.1} parent=5 // pred_check
        _
      $region26: #{tpu_custom_call.1} parent=5 // pred_check_branch
        %128 = sbr.rel (%p125) target = $region28
      $region27: #{tpu_custom_call.1} parent=5 // pred_region
        %s129 = ssub.s32 %s11, 1
        %s130 = smul.u32 48, %s16
        %s131 = ssub.s32 75, %s130
        %p132 = scmp.lt.s32.totalorder %s131, 48
        %s133 = scalar_select %p132, %s131, 48
        %s134 = smul.u32 8, %s133
        %p135 = scmp.lt.s32.totalorder %s130, 74
        %s136 = scalar_select %p135, %s130, 74
        %s137 = smul.addr %s136, 8
        %s138 = scalar_lea.vmem %s0, %s137
        %p139 = pneg %p37
        %p140 = pneg %p34
        %p141 = pneg %p58
        %p142 = pneg %p55
        %p143 = pneg %p84
        %p144 = pneg %p81
        %s145 = sand.u32 %s71, 1
        %s146 = scalar_lea.sflag [#allocation3], %s145
        %s147 = sand.u32 %s71, 1
        %s148 = smul.addr %s147, 3
        %s149 = scalar_lea.vmem [#allocation2], %s148
        %s150 = smul.u32 48, %s16
        %s151 = ssub.s32 75, %s150
        %p152 = scmp.lt.s32.totalorder %s151, 48
        %s153 = scalar_select %p152, %s151, 48
        %s154 = smul.u32 8, %s153
        %p155 = scmp.lt.s32.totalorder %s150, 74
        %s156 = scalar_select %p155, %s150, 74
        %s157 = smul.addr %s156, 8
        %s158 = scalar_lea.vmem %s0, %s157
        %s159 = smul.u32 48, %s16
        %s160 = ssub.s32 75, %s159
        %p161 = scmp.lt.s32.totalorder %s160, 48
        %s162 = scalar_select %p161, %s160, 48
        %s163 = smul.u32 8, %s162
        %s164 = smul.u32 3, %s16
        %s165 = ssub.s32 5, %s164
        %p166 = scmp.lt.s32.totalorder %s165, 3
        %s167 = scalar_select %p166, %s165, 3
        %v168 = vld [vmem:[%s158] sm:$0xff]
        %v169 = vld [vmem:[%s158 + $0x8] sm:$0xff]
        %v170 = vld [vmem:[%s158 + $0x10] sm:$0xff]
        %v171 = vld [vmem:[%s158 + $0x18] sm:$0xff]
        %v172 = vld [vmem:[%s158 + $0x20] sm:$0xff]
        %v173 = vld [vmem:[%s158 + $0x28] sm:$0xff]
        %v174 = vld [vmem:[%s158 + $0x30] sm:$0xff]
        %v175 = vld [vmem:[%s158 + $0x38] sm:$0xff]
        %v176 = vld [vmem:[%s158 + $0x40] sm:$0xff]
        %v177 = vld [vmem:[%s158 + $0x48] sm:$0xff]
        %v178 = vld [vmem:[%s158 + $0x50] sm:$0xff]
        %v179 = vld [vmem:[%s158 + $0x58] sm:$0xff]
        %v180 = vld [vmem:[%s158 + $0x60] sm:$0xff]
        %v181 = vld [vmem:[%s158 + $0x68] sm:$0xff]
        %v182 = vld [vmem:[%s158 + $0x70] sm:$0xff]
        %v183 = vld [vmem:[%s158 + $0x78] sm:$0xff]
        %v184 = vld [vmem:[%s158 + $0x80] sm:$0xff]
        %v185 = vld [vmem:[%s158 + $0x88] sm:$0xff]
        %v186 = vld [vmem:[%s158 + $0x90] sm:$0xff]
        %v187 = vld [vmem:[%s158 + $0x98] sm:$0xff]
        %v188 = vld [vmem:[%s158 + $0xa0] sm:$0xff]
        %v189 = vld [vmem:[%s158 + $0xa8] sm:$0xff]
        %v190 = vld [vmem:[%s158 + $0xb0] sm:$0xff]
        %v191 = vld [vmem:[%s158 + $0xb8] sm:$0xff]
        %v192 = vld [vmem:[%s158 + $0xc0] sm:$0xff]
        %v193 = vld [vmem:[%s158 + $0xc8] sm:$0xff]
        %v194 = vld [vmem:[%s158 + $0xd0] sm:$0xff]
        %v195 = vld [vmem:[%s158 + $0xd8] sm:$0xff]
        %v196 = vld [vmem:[%s158 + $0xe0] sm:$0xff]
        %v197 = vld [vmem:[%s158 + $0xe8] sm:$0xff]
        %v198 = vld [vmem:[%s158 + $0xf0] sm:$0xff]
        %v199 = vld [vmem:[%s158 + $0xf8] sm:$0xff]
        %v200 = vld [vmem:[%s158 + $0x100] sm:$0xff]
        %v201 = vld [vmem:[%s158 + $0x108] sm:$0xff]
        %v202 = vld [vmem:[%s158 + $0x110] sm:$0xff]
        %v203 = vld [vmem:[%s158 + $0x118] sm:$0xff]
        %v204 = vld [vmem:[%s158 + $0x120] sm:$0xff]
        %v205 = vld [vmem:[%s158 + $0x128] sm:$0xff]
        %v206 = vld [vmem:[%s158 + $0x130] sm:$0xff]
        %v207 = vld [vmem:[%s158 + $0x138] sm:$0xff]
        %v208 = vld [vmem:[%s158 + $0x140] sm:$0xff]
        %v209 = vld [vmem:[%s158 + $0x148] sm:$0xff]
        %v210 = vld [vmem:[%s158 + $0x150] sm:$0xff]
        %v211 = vld [vmem:[%s158 + $0x158] sm:$0xff]
        %v212 = vld [vmem:[%s158 + $0x160] sm:$0xff]
        %v213 = vld [vmem:[%s158 + $0x168] sm:$0xff]
        %v214 = vld [vmem:[%s158 + $0x170] sm:$0xff]
        %v215 = vld [vmem:[%s158 + $0x178] sm:$0xff]
        %v216 = vld [vmem:[%s1] sm:$0xff]
        %v217 = vld [vmem:[%s1 + $0x8] sm:$0xff]
        %219 = vset.pattern.permute.xlu0 64
        %220 = vperm.xlu0 %219, %v216
        %v221 = vpop.permute.xlu0 %220
        %224 = vset.pattern.permute.xlu0 64
        %225 = vperm.xlu0 %224, %v217
        %v226 = vpop.permute.xlu0 %225
        %vm228 = vcmask 89088
        %v229 = vsel %vm228, %v216, 0
        %v231 = vsel %vm228, %v217, 0
        %v234 = vsel %vm228, %v168, 0
        %v237 = vsel %vm228, %v169, 0
        %v240 = vsel %vm228, %v170, 0
        %v243 = vsel %vm228, %v171, 0
        %v246 = vsel %vm228, %v172, 0
        %v249 = vsel %vm228, %v173, 0
        %v252 = vsel %vm228, %v174, 0
        %v255 = vsel %vm228, %v175, 0
        %v258 = vsel %vm228, %v176, 0
        %v261 = vsel %vm228, %v177, 0
        %v264 = vsel %vm228, %v178, 0
        %v267 = vsel %vm228, %v179, 0
        %v270 = vsel %vm228, %v180, 0
        %v273 = vsel %vm228, %v181, 0
        %v276 = vsel %vm228, %v182, 0
        %v279 = vsel %vm228, %v183, 0
        %v282 = vsel %vm228, %v184, 0
        %v285 = vsel %vm228, %v185, 0
        %v288 = vsel %vm228, %v186, 0
        %v291 = vsel %vm228, %v187, 0
        %v294 = vsel %vm228, %v188, 0
        %v297 = vsel %vm228, %v189, 0
        %v300 = vsel %vm228, %v190, 0
        %v303 = vsel %vm228, %v191, 0
        %v306 = vsel %vm228, %v192, 0
        %v309 = vsel %vm228, %v193, 0
        %v312 = vsel %vm228, %v194, 0
        %v315 = vsel %vm228, %v195, 0
        %v318 = vsel %vm228, %v196, 0
        %v321 = vsel %vm228, %v197, 0
        %v324 = vsel %vm228, %v198, 0
        %v327 = vsel %vm228, %v199, 0
        %v330 = vsel %vm228, %v200, 0
        %v333 = vsel %vm228, %v201, 0
        %v336 = vsel %vm228, %v202, 0
        %v339 = vsel %vm228, %v203, 0
        %v342 = vsel %vm228, %v204, 0
        %v345 = vsel %vm228, %v205, 0
        %v348 = vsel %vm228, %v206, 0
        %v351 = vsel %vm228, %v207, 0
        %v354 = vsel %vm228, %v208, 0
        %v357 = vsel %vm228, %v209, 0
        %v360 = vsel %vm228, %v210, 0
        %v363 = vsel %vm228, %v211, 0
        %v366 = vsel %vm228, %v212, 0
        %v369 = vsel %vm228, %v213, 0
        %v372 = vsel %vm228, %v214, 0
        %v375 = vsel %vm228, %v215, 0
        %377 = vmatpush.xpose.msra.mxu0 %v279
        %378 = vmatpush.xpose.msra.mxu0 %v276
        %379 = vmatpush.xpose.msra.mxu0 %v273
        %380 = vmatpush.xpose.msra.mxu0 %v270
        %381 = vmatpush.xpose.msra.mxu0 %v267
        %382 = vmatpush.xpose.msra.mxu0 %v264
        %383 = vmatpush.xpose.msra.mxu0 %v261
        %384 = vmatpush.xpose.msra.mxu0 %v258
        %385 = vmatpush.xpose.msra.mxu0 %v255
        %386 = vmatpush.xpose.msra.mxu0 %v252
        %387 = vmatpush.xpose.msra.mxu0 %v249
        %388 = vmatpush.xpose.msra.mxu0 %v246
        %389 = vmatpush.xpose.msra.mxu0 %v243
        %390 = vmatpush.xpose.msra.mxu0 %v240
        %391 = vmatpush.xpose.msra.mxu0 %v237
        %392 = vmatpush.xpose.msra.mxu0 %v234
        %393 = vmatmul.f32.gmra.mxu0 %v229
        %v394 = vpop.f32.mrf.mxu0
        %v395 = vadd.f32 %v221, %v394
        %396 = vmatmul.f32.gmra.mxu0 %v231
        %v397 = vpop.f32.mrf.mxu0
        %v398 = vadd.f32 %v226, %v397
        %399 = vdwg.mxu0
        %400 = vmatpush.xpose.msra.mxu0 %v327
        %401 = vmatpush.xpose.msra.mxu0 %v324
        %402 = vmatpush.xpose.msra.mxu0 %v321
        %403 = vmatpush.xpose.msra.mxu0 %v318
        %404 = vmatpush.xpose.msra.mxu0 %v315
        %405 = vmatpush.xpose.msra.mxu0 %v312
        %406 = vmatpush.xpose.msra.mxu0 %v309
        %407 = vmatpush.xpose.msra.mxu0 %v306
        %408 = vmatpush.xpose.msra.mxu0 %v303
        %409 = vmatpush.xpose.msra.mxu0 %v300
        %410 = vmatpush.xpose.msra.mxu0 %v297
        %411 = vmatpush.xpose.msra.mxu0 %v294
        %412 = vmatpush.xpose.msra.mxu0 %v291
        %413 = vmatpush.xpose.msra.mxu0 %v288
        %414 = vmatpush.xpose.msra.mxu0 %v285
        %415 = vmatpush.xpose.msra.mxu0 %v282
        %416 = vmatmul.f32.gmra.mxu0 %v229
        %v417 = vpop.f32.mrf.mxu0
        %v418 = vadd.f32 %v221, %v417
        %419 = vmatmul.f32.gmra.mxu0 %v231
        %v420 = vpop.f32.mrf.mxu0
        %v421 = vadd.f32 %v226, %v420
        %422 = vdwg.mxu0
        %423 = vmatpush.xpose.msra.mxu0 %v375
        %424 = vmatpush.xpose.msra.mxu0 %v372
        %425 = vmatpush.xpose.msra.mxu0 %v369
        %426 = vmatpush.xpose.msra.mxu0 %v366
        %427 = vmatpush.xpose.msra.mxu0 %v363
        %428 = vmatpush.xpose.msra.mxu0 %v360
        %429 = vmatpush.xpose.msra.mxu0 %v357
        %430 = vmatpush.xpose.msra.mxu0 %v354
        %431 = vmatpush.xpose.msra.mxu0 %v351
        %432 = vmatpush.xpose.msra.mxu0 %v348
        %433 = vmatpush.xpose.msra.mxu0 %v345
        %434 = vmatpush.xpose.msra.mxu0 %v342
        %435 = vmatpush.xpose.msra.mxu0 %v339
        %436 = vmatpush.xpose.msra.mxu0 %v336
        %437 = vmatpush.xpose.msra.mxu0 %v333
        %438 = vmatpush.xpose.msra.mxu0 %v330
        %439 = vmatmul.f32.gmra.mxu0 %v229
        %v440 = vpop.f32.mrf.mxu0
        %v441 = vadd.f32 %v221, %v440
        %442 = vmatmul.f32.gmra.mxu0 %v231
        %v443 = vpop.f32.mrf.mxu0
        %v444 = vadd.f32 %v226, %v443
        %445 = vdwg.mxu0
        %v446 = vmax.f32 %v395, 0.0
        %v447 = vmax.f32 %v418, 0.0
        %v448 = vmax.f32 %v441, 0.0
        %v449 = vmax.f32 %v398, 0.0
        %v450 = vmax.f32 %v421, 0.0
        %v451 = vmax.f32 %v444, 0.0
        %v452 = vld [vmem:[%s1 + $0x10] sm:$0xff]
        %v453 = vld [vmem:[%s1 + $0x18] sm:$0xff]
        %v454 = vld [vmem:[%s1 + $0x20] sm:$0xff]
        %v455 = vld [vmem:[%s1 + $0x28] sm:$0xff]
        %457 = vset.pattern.permute.xlu0 64
        %458 = vperm.xlu0 %457, %v452
        %v459 = vpop.permute.xlu0 %458
        %462 = vset.pattern.permute.xlu0 64
        %463 = vperm.xlu0 %462, %v453
        %v464 = vpop.permute.xlu0 %463
        %467 = vset.pattern.permute.xlu0 64
        %468 = vperm.xlu0 %467, %v454
        %v469 = vpop.permute.xlu0 %468
        %472 = vset.pattern.permute.xlu0 64
        %473 = vperm.xlu0 %472, %v455
        %v474 = vpop.permute.xlu0 %473
        %vm476 = vcmask 130048
        %v477 = vsel %vm476, %v452, 0
        %v479 = vsel %vm476, %v453, 0
        %v481 = vsel %vm476, %v454, 0
        %v483 = vsel %vm476, %v455, 0
        %485 = vmatpush.msra.mxu0 0.0
        %486 = vmatpush.msra.mxu0 0.0
        %487 = vmatpush.msra.mxu0 0.0
        %488 = vmatpush.msra.mxu0 0.0
        %489 = vmatpush.msra.mxu0 0.0
        %490 = vmatpush.msra.mxu0 0.0
        %491 = vmatpush.msra.mxu0 0.0
        %492 = vmatpush.msra.mxu0 0.0
        %493 = vmatpush.msra.mxu0 0.0
        %494 = vmatpush.msra.mxu0 0.0
        %495 = vmatpush.msra.mxu0 0.0
        %496 = vmatpush.msra.mxu0 0.0
        %497 = vmatpush.msra.mxu0 0.0
        %498 = vmatpush.msra.mxu0 0.0
        %499 = vmatpush.msra.mxu0 %v449
        %500 = vmatpush.msra.mxu0 %v446
        %501 = vmatmul.f32.gmra.mxu0 %v477
        %v502 = vpop.f32.mrf.mxu0
        %v503 = vadd.f32 %v459, %v502
        %504 = vmatmul.f32.gmra.mxu0 %v479
        %v505 = vpop.f32.mrf.mxu0
        %v506 = vadd.f32 %v464, %v505
        %507 = vmatmul.f32.gmra.mxu0 %v481
        %v508 = vpop.f32.mrf.mxu0
        %v509 = vadd.f32 %v469, %v508
        %510 = vmatmul.f32.gmra.mxu0 %v483
        %v511 = vpop.f32.mrf.mxu0
        %v512 = vadd.f32 %v474, %v511
        %513 = vdwg.mxu0
        %514 = vmatpush.msra.mxu0 0.0
        %515 = vmatpush.msra.mxu0 0.0
        %516 = vmatpush.msra.mxu0 0.0
        %517 = vmatpush.msra.mxu0 0.0
        %518 = vmatpush.msra.mxu0 0.0
        %519 = vmatpush.msra.mxu0 0.0
        %520 = vmatpush.msra.mxu0 0.0
        %521 = vmatpush.msra.mxu0 0.0
        %522 = vmatpush.msra.mxu0 0.0
        %523 = vmatpush.msra.mxu0 0.0
        %524 = vmatpush.msra.mxu0 0.0
        %525 = vmatpush.msra.mxu0 0.0
        %526 = vmatpush.msra.mxu0 0.0
        %527 = vmatpush.msra.mxu0 0.0
        %528 = vmatpush.msra.mxu0 %v450
        %529 = vmatpush.msra.mxu0 %v447
        %530 = vmatmul.f32.gmra.mxu0 %v477
        %v531 = vpop.f32.mrf.mxu0
        %v532 = vadd.f32 %v459, %v531
        %533 = vmatmul.f32.gmra.mxu0 %v479
        %v534 = vpop.f32.mrf.mxu0
        %v535 = vadd.f32 %v464, %v534
        %536 = vmatmul.f32.gmra.mxu0 %v481
        %v537 = vpop.f32.mrf.mxu0
        %v538 = vadd.f32 %v469, %v537
        %539 = vmatmul.f32.gmra.mxu0 %v483
        %v540 = vpop.f32.mrf.mxu0
        %v541 = vadd.f32 %v474, %v540
        %542 = vdwg.mxu0
        %543 = vmatpush.msra.mxu0 0.0
        %544 = vmatpush.msra.mxu0 0.0
        %545 = vmatpush.msra.mxu0 0.0
        %546 = vmatpush.msra.mxu0 0.0
        %547 = vmatpush.msra.mxu0 0.0
        %548 = vmatpush.msra.mxu0 0.0
        %549 = vmatpush.msra.mxu0 0.0
        %550 = vmatpush.msra.mxu0 0.0
        %551 = vmatpush.msra.mxu0 0.0
        %552 = vmatpush.msra.mxu0 0.0
        %553 = vmatpush.msra.mxu0 0.0
        %554 = vmatpush.msra.mxu0 0.0
        %555 = vmatpush.msra.mxu0 0.0
        %556 = vmatpush.msra.mxu0 0.0
        %557 = vmatpush.msra.mxu0 %v451
        %558 = vmatpush.msra.mxu0 %v448
        %559 = vmatmul.f32.gmra.mxu0 %v477
        %v560 = vpop.f32.mrf.mxu0
        %v561 = vadd.f32 %v459, %v560
        %562 = vmatmul.f32.gmra.mxu0 %v479
        %v563 = vpop.f32.mrf.mxu0
        %v564 = vadd.f32 %v464, %v563
        %565 = vmatmul.f32.gmra.mxu0 %v481
        %v566 = vpop.f32.mrf.mxu0
        %v567 = vadd.f32 %v469, %v566
        %568 = vmatmul.f32.gmra.mxu0 %v483
        %v569 = vpop.f32.mrf.mxu0
        %v570 = vadd.f32 %v474, %v569
        %571 = vdwg.mxu0
        %v572 = vmax.f32 %v503, 0.0
        %v573 = vmax.f32 %v532, 0.0
        %v574 = vmax.f32 %v561, 0.0
        %v575 = vmax.f32 %v506, 0.0
        %v576 = vmax.f32 %v535, 0.0
        %v577 = vmax.f32 %v564, 0.0
        %v578 = vmax.f32 %v509, 0.0
        %v579 = vmax.f32 %v538, 0.0
        %v580 = vmax.f32 %v567, 0.0
        %v581 = vmax.f32 %v512, 0.0
        %v582 = vmax.f32 %v541, 0.0
        %v583 = vmax.f32 %v570, 0.0
        %v584 = vld [vmem:[%s1 + $0x30] sm:$0xff]
        %v585 = vld [vmem:[%s1 + $0x38] sm:$0xff]
        %v586 = vld [vmem:[%s1 + $0x40] sm:$0xff]
        %v587 = vld [vmem:[%s1 + $0x48] sm:$0xff]
        %589 = vset.pattern.permute.xlu0 64
        %590 = vperm.xlu0 %589, %v584
        %v591 = vpop.permute.xlu0 %590
        %594 = vset.pattern.permute.xlu0 64
        %595 = vperm.xlu0 %594, %v585
        %v596 = vpop.permute.xlu0 %595
        %599 = vset.pattern.permute.xlu0 64
        %600 = vperm.xlu0 %599, %v586
        %v601 = vpop.permute.xlu0 %600
        %604 = vset.pattern.permute.xlu0 64
        %605 = vperm.xlu0 %604, %v587
        %v606 = vpop.permute.xlu0 %605
        %vm608 = vcmask 261120
        %v609 = vsel %vm608, %v584, 0
        %v611 = vsel %vm608, %v585, 0
        %v613 = vsel %vm608, %v586, 0
        %v615 = vsel %vm608, %v587, 0
        %617 = vmatpush.msra.mxu0 0.0
        %618 = vmatpush.msra.mxu0 0.0
        %619 = vmatpush.msra.mxu0 0.0
        %620 = vmatpush.msra.mxu0 0.0
        %621 = vmatpush.msra.mxu0 0.0
        %622 = vmatpush.msra.mxu0 0.0
        %623 = vmatpush.msra.mxu0 0.0
        %624 = vmatpush.msra.mxu0 0.0
        %625 = vmatpush.msra.mxu0 0.0
        %626 = vmatpush.msra.mxu0 0.0
        %627 = vmatpush.msra.mxu0 0.0
        %628 = vmatpush.msra.mxu0 0.0
        %629 = vmatpush.msra.mxu0 %v581
        %630 = vmatpush.msra.mxu0 %v578
        %631 = vmatpush.msra.mxu0 %v575
        %632 = vmatpush.msra.mxu0 %v572
        %633 = vmatmul.f32.gmra.mxu0 %v609
        %v634 = vpop.f32.mrf.mxu0
        %v635 = vadd.f32 %v591, %v634
        %636 = vmatmul.f32.gmra.mxu0 %v611
        %v637 = vpop.f32.mrf.mxu0
        %v638 = vadd.f32 %v596, %v637
        %639 = vmatmul.f32.gmra.mxu0 %v613
        %v640 = vpop.f32.mrf.mxu0
        %v641 = vadd.f32 %v601, %v640
        %642 = vmatmul.f32.gmra.mxu0 %v615
        %v643 = vpop.f32.mrf.mxu0
        %v644 = vadd.f32 %v606, %v643
        %645 = vdwg.mxu0
        %646 = vmatpush.msra.mxu0 0.0
        %647 = vmatpush.msra.mxu0 0.0
        %648 = vmatpush.msra.mxu0 0.0
        %649 = vmatpush.msra.mxu0 0.0
        %650 = vmatpush.msra.mxu0 0.0
        %651 = vmatpush.msra.mxu0 0.0
        %652 = vmatpush.msra.mxu0 0.0
        %653 = vmatpush.msra.mxu0 0.0
        %654 = vmatpush.msra.mxu0 0.0
        %655 = vmatpush.msra.mxu0 0.0
        %656 = vmatpush.msra.mxu0 0.0
        %657 = vmatpush.msra.mxu0 0.0
        %658 = vmatpush.msra.mxu0 %v582
        %659 = vmatpush.msra.mxu0 %v579
        %660 = vmatpush.msra.mxu0 %v576
        %661 = vmatpush.msra.mxu0 %v573
        %662 = vmatmul.f32.gmra.mxu0 %v609
        %v663 = vpop.f32.mrf.mxu0
        %v664 = vadd.f32 %v591, %v663
        %665 = vmatmul.f32.gmra.mxu0 %v611
        %v666 = vpop.f32.mrf.mxu0
        %v667 = vadd.f32 %v596, %v666
        %668 = vmatmul.f32.gmra.mxu0 %v613
        %v669 = vpop.f32.mrf.mxu0
        %v670 = vadd.f32 %v601, %v669
        %671 = vmatmul.f32.gmra.mxu0 %v615
        %v672 = vpop.f32.mrf.mxu0
        %v673 = vadd.f32 %v606, %v672
        %674 = vdwg.mxu0
        %675 = vmatpush.msra.mxu0 0.0
        %676 = vmatpush.msra.mxu0 0.0
        %677 = vmatpush.msra.mxu0 0.0
        %678 = vmatpush.msra.mxu0 0.0
        %679 = vmatpush.msra.mxu0 0.0
        %680 = vmatpush.msra.mxu0 0.0
        %681 = vmatpush.msra.mxu0 0.0
        %682 = vmatpush.msra.mxu0 0.0
        %683 = vmatpush.msra.mxu0 0.0
        %684 = vmatpush.msra.mxu0 0.0
        %685 = vmatpush.msra.mxu0 0.0
        %686 = vmatpush.msra.mxu0 0.0
        %687 = vmatpush.msra.mxu0 %v583
        %688 = vmatpush.msra.mxu0 %v580
        %689 = vmatpush.msra.mxu0 %v577
        %690 = vmatpush.msra.mxu0 %v574
        %691 = vmatmul.f32.gmra.mxu0 %v609
        %v692 = vpop.f32.mrf.mxu0
        %v693 = vadd.f32 %v591, %v692
        %694 = vmatmul.f32.gmra.mxu0 %v611
        %v695 = vpop.f32.mrf.mxu0
        %v696 = vadd.f32 %v596, %v695
        %697 = vmatmul.f32.gmra.mxu0 %v613
        %v698 = vpop.f32.mrf.mxu0
        %v699 = vadd.f32 %v601, %v698
        %700 = vmatmul.f32.gmra.mxu0 %v615
        %v701 = vpop.f32.mrf.mxu0
        %v702 = vadd.f32 %v606, %v701
        %703 = vdwg.mxu0
        %v704 = vmax.f32 %v635, 0.0
        %v705 = vmax.f32 %v664, 0.0
        %v706 = vmax.f32 %v693, 0.0
        %v707 = vmax.f32 %v638, 0.0
        %v708 = vmax.f32 %v667, 0.0
        %v709 = vmax.f32 %v696, 0.0
        %v710 = vmax.f32 %v641, 0.0
        %v711 = vmax.f32 %v670, 0.0
        %v712 = vmax.f32 %v699, 0.0
        %v713 = vmax.f32 %v644, 0.0
        %v714 = vmax.f32 %v673, 0.0
        %v715 = vmax.f32 %v702, 0.0
        %v716 = vld [vmem:[%s1 + $0x50] sm:$0x1]
        %718 = vset.pattern.permute.xlu0 64
        %719 = vperm.xlu0 %718, %v716
        %v720 = vpop.permute.xlu0 %719
        %v722 = vsel %vm608, %v716, 0
        %724 = vmatpush.msra.mxu0 0.0
        %725 = vmatpush.msra.mxu0 0.0
        %726 = vmatpush.msra.mxu0 0.0
        %727 = vmatpush.msra.mxu0 0.0
        %728 = vmatpush.msra.mxu0 0.0
        %729 = vmatpush.msra.mxu0 0.0
        %730 = vmatpush.msra.mxu0 0.0
        %731 = vmatpush.msra.mxu0 0.0
        %732 = vmatpush.msra.mxu0 0.0
        %733 = vmatpush.msra.mxu0 0.0
        %734 = vmatpush.msra.mxu0 0.0
        %735 = vmatpush.msra.mxu0 0.0
        %736 = vmatpush.msra.mxu0 %v713
        %737 = vmatpush.msra.mxu0 %v710
        %738 = vmatpush.msra.mxu0 %v707
        %739 = vmatpush.msra.mxu0 %v704
        %740 = vmatmul.f32.gmra.mxu0 %v722
        %v741 = vpop.f32.mrf.mxu0
        %v742 = vadd.f32 %v720, %v741
        %743 = vdwg.mxu0
        %744 = vmatpush.msra.mxu0 0.0
        %745 = vmatpush.msra.mxu0 0.0
        %746 = vmatpush.msra.mxu0 0.0
        %747 = vmatpush.msra.mxu0 0.0
        %748 = vmatpush.msra.mxu0 0.0
        %749 = vmatpush.msra.mxu0 0.0
        %750 = vmatpush.msra.mxu0 0.0
        %751 = vmatpush.msra.mxu0 0.0
        %752 = vmatpush.msra.mxu0 0.0
        %753 = vmatpush.msra.mxu0 0.0
        %754 = vmatpush.msra.mxu0 0.0
        %755 = vmatpush.msra.mxu0 0.0
        %756 = vmatpush.msra.mxu0 %v714
        %757 = vmatpush.msra.mxu0 %v711
        %758 = vmatpush.msra.mxu0 %v708
        %759 = vmatpush.msra.mxu0 %v705
        %760 = vmatmul.f32.gmra.mxu0 %v722
        %v761 = vpop.f32.mrf.mxu0
        %v762 = vadd.f32 %v720, %v761
        %763 = vdwg.mxu0
        %764 = vmatpush.msra.mxu0 0.0
        %765 = vmatpush.msra.mxu0 0.0
        %766 = vmatpush.msra.mxu0 0.0
        %767 = vmatpush.msra.mxu0 0.0
        %768 = vmatpush.msra.mxu0 0.0
        %769 = vmatpush.msra.mxu0 0.0
        %770 = vmatpush.msra.mxu0 0.0
        %771 = vmatpush.msra.mxu0 0.0
        %772 = vmatpush.msra.mxu0 0.0
        %773 = vmatpush.msra.mxu0 0.0
        %774 = vmatpush.msra.mxu0 0.0
        %775 = vmatpush.msra.mxu0 0.0
        %776 = vmatpush.msra.mxu0 %v715
        %777 = vmatpush.msra.mxu0 %v712
        %778 = vmatpush.msra.mxu0 %v709
        %779 = vmatpush.msra.mxu0 %v706
        %780 = vmatmul.f32.gmra.mxu0 %v722
        %v781 = vpop.f32.mrf.mxu0
        %v782 = vadd.f32 %v720, %v781
        %783 = vdwg.mxu0
        %v787 = vrot.slane %v762, 7
        %v788 = vrot.slane %v782, 6
        %vm789 = vcmask 1040384
        %v790 = vsel %vm789, %v742, %v787
        %vm791 = vcmask 1041408
        %v792 = vsel %vm791, %v790, %v788
        %v794 = vlaneseq
        %vm795 = vcmp.ge.s32.totalorder %v794, 0
        %vm796 = vcmp.lt.s32.totalorder %v794, 384
        %vm797 = vmand %vm795, %vm796
        %798 = vst.msk [vmem:[%s149] sm:$0x7] %vm797, %v792
        %s799 = sand.u32 %s71, 1
        %s800 = scalar_lea.sflag [#allocation3], %s799
        %s801 = sand.u32 %s71, 1
        %s802 = smul.addr %s801, 3
        %s803 = scalar_lea.vmem [#allocation2], %s802
        // Predicated region
        $region29: #{tpu_custom_call.1} parent=27 // pred_check
          %p804 = pneg %p81
        $region30: #{tpu_custom_call.1} parent=27 // pred_check_branch
          %806 = sbr.rel (%p804) target = $region32
        $region31: #{tpu_custom_call.1} parent=27 // pred_region
          %s807 = smul.u32 3, %s16
          %s808 = ssub.s32 5, %s807
          %p809 = scmp.lt.s32.totalorder %s808, 3
          %s810 = scalar_select %p809, %s808, 3
          %s811 = ssub.s32 3, %s810
          %s812 = sshll.u32 %s811, 4
          %813 = vsyncadd %s800, %s812
          %p814 = scmp.ne.s32.totalorder 0, %s810
          %s815 = scalar_lea.hbm %s2, %s807
          %s816 = sshll.u32 %s810, 4
          %s817 = sshll.u32 %s803, 4
          %s818 = int_to_ptr.vmem [resolvable:$true] %s817
          %s819 = sshll.u32 %s815, 4
          %s820 = int_to_ptr.hbm [resolvable:$true] %s819
          %822 = dma.vmem_to_hbm [thread:$0]  (%p814), %s818, %s816, %s820, %s800
        $region32: #{tpu_custom_call.1} parent=27 // pred_fallthru
          _
      $region28: #{tpu_custom_call.1} parent=5 // pred_fallthru
        _
      %p823 = scmp.le.s32.totalorder 2, %s11
      // Predicated region
      $region33: #{tpu_custom_call.1} parent=5 // pred_check
        %p824 = pneg %p823
      $region34: #{tpu_custom_call.1} parent=5 // pred_check_branch
        %826 = sbr.rel (%p824) target = $region36
      $region35: #{tpu_custom_call.1} parent=5 // pred_region
        %s827 = ssub.s32 %s11, 2
        // Predicated region
        $region37: #{tpu_custom_call.1} parent=35 // pred_check
          %p828 = pneg %p87
        $region38: #{tpu_custom_call.1} parent=35 // pred_check_branch
          %830 = sbr.rel (%p828) target = $region40
        $region39: #{tpu_custom_call.1} parent=35 // pred_region
          %s831 = sand.u32 %s72, 1
          %s832 = scalar_lea.sflag [#allocation3], %s831
          %s833 = sand.u32 %s72, 1
          %s834 = smul.addr %s833, 3
          %s835 = scalar_lea.vmem [#allocation2], %s834
          %837 = dma.done %s832, 48
        $region40: #{tpu_custom_call.1} parent=35 // pred_fallthru
          _
      $region36: #{tpu_custom_call.1} parent=5 // pred_fallthru
        _
    $region6: #{tpu_custom_call.1} parent=1 // loop_footer
      %s15 = sadd.s32 1, %s11
    $region7: #{tpu_custom_call.1} parent=1 // loop_footer_branch
      %10 = sbr.rel target = $region3
    $region8: #{tpu_custom_call.1} parent=1 // loop_exit
      _
    %838 = vsyncpa [#allocation3], 1
    %s839 = scalar_lea.sflag [#allocation3], 1
    %840 = vsyncpa %s839, 1

</llo_original>
